<compile_context>
chip_gen: v6e
topology: v6e:2x2x1
jax: 0.10.0
libtpu: 0.0.40
codegen_flags: <defaults>
</compile_context>

<pallas_src>
import functools
import math

import numpy as np
import jax
import jax.numpy as jnp
from jax.experimental import pallas as pl
from jax.experimental.pallas import tpu as pltpu


# --------------------------------------------------------------------------
# Small helpers
# --------------------------------------------------------------------------

def _round_up(x, m):
    return (x + m - 1) // m * m


def _divisors_desc(n):
    return [d for d in range(n, 0, -1) if n % d == 0]


def _vmem_capacity_bytes():
    """Physical VMEM of the local TPU; conservative 64 MiB (v7x) if unknown."""
    try:
        return int(pltpu.get_tpu_info().vmem_capacity_bytes)
    except Exception:
        return 64 << 20


def _fused_scalars(htensor, params):
    """Hoisted hyper-scalar path: per-batch weight scalars + fused bias (f32)."""
    Cout = params["elem_weight"].shape[0]
    es = params["elem_scalar"][0]
    hs = htensor.astype(jnp.float32) @ params["htensor_to_scalars"].T.astype(jnp.float32)
    wsc = hs[:, :Cout]                                   # (B, Cout) hyper weight scalars
    bsc = hs[:, Cout:]                                   # (B, Cout) hyper bias scalars
    bias = es * params["elem_bias"][None, :] + bsc * params["hnet_bias"][None, :]
    return wsc, bias                                     # (B, Cout), (B, Cout)


def _combined_weight(we2d, wh2d, wsc, es, coutp, compute_dtype):
    """Per-batch combined weight  es*elem + wsc_b*hnet  -> (B, CoutP, F)."""
    cout, _ = we2d.shape
    w = es * we2d[None, :, :] + wsc[:, :, None] * wh2d[None, :, :]
    if coutp != cout:
        w = jnp.pad(w, ((0, 0), (0, coutp - cout), (0, 0)))
    return w.astype(compute_dtype)


def _pad_cols(a, n):
    if a.shape[1] == n:
        return a
    return jnp.pad(a, ((0, 0), (0, n - a.shape[1])))


# --------------------------------------------------------------------------
# Main (stride == 1) path: in-kernel im2col over row-tile slabs
# --------------------------------------------------------------------------

def _hyperconv_fused_kernel(x_ref, w_ref, bias_ref, out_ref, *, K, Wp):
    # x_ref:    (1, 1, Cin, slab_len)  compute dtype; flattened (rows, Wp) slab + K-1 pad
    # w_ref:    (1, CoutP, K*K*Cin)    compute dtype; per-batch combined weight (tap-major)
    # bias_ref: (1, CoutP, 1) f32      per-batch fused bias
    # out_ref:  (1, CoutP, TH*Wp) f32  lane-dense "wide" output tile
    tpw = out_ref.shape[2]
    taps = []
    for i in range(K):
        for j in range(K):
            off = i * Wp + j                             # static lane offset per tap
            taps.append(x_ref[0, 0, :, off:off + tpw])   # (Cin, TH*Wp)
    pat = taps[0] if len(taps) == 1 else jnp.concatenate(taps, axis=0)   # (K*K*Cin, TH*Wp)
    acc = jnp.dot(w_ref[0], pat, preferred_element_type=jnp.float32)     # (CoutP, TH*Wp) f32
    out_ref[0] = (acc + bias_ref[0]).astype(out_ref.dtype)


def _choose_th(Ho, Wp, Cin, F, CoutP, K, itemsize, budget, prefer_split):
    """Largest divisor-of-Ho row tile whose full working set fits the VMEM budget."""
    def ws(th):
        slab = Cin * ((th + K - 1) * Wp + K) * itemsize           # input slab
        wbytes = CoutP * F * itemsize                             # combined weight
        outb = CoutP * th * Wp * 4                                # f32 output tile
        patb = F * th * Wp * itemsize                             # in-kernel patch temp
        accb = CoutP * th * Wp * 4                                # f32 matmul accumulator
        return 2 * (slab + wbytes + outb) + patb + accb + 8 * CoutP * 4
    cands = [th for th in _divisors_desc(Ho)
             if (th == Ho or (th * Wp) % 128 == 0) and ws(th) <= budget]
    if not cands:
        return None
    if prefer_split:                                   # keep both v7x TensorCores busy
        split = [th for th in cands if th <= (Ho + 1) // 2]
        if split:
            return split[0]
    return cands[0]


def _forward_fused(x, params, wsc, bias, *, K, padding, compute_dtype, vmem_cap):
    B, Cin, H, W = x.shape
    Cout = params["elem_weight"].shape[0]
    Hp, Wp = H + 2 * padding, W + 2 * padding
    Ho, Wo = Hp - K + 1, Wp - K + 1
    F = K * K * Cin
    CoutP = _round_up(Cout, 8)
    itemsize = jnp.dtype(compute_dtype).itemsize

    TH = _choose_th(Ho, Wp, Cin, F, CoutP, K, itemsize,
                    budget=vmem_cap // 2, prefer_split=(B == 1))
    if TH is None:
        return None                                    # caller falls back to patch path
    n_ht = Ho // TH
    tpw = TH * Wp

    es = params["elem_scalar"][0]
    # Tap-major feature order (i, j, c) to match the in-kernel concatenate order.
    we = params["elem_weight"].transpose(0, 2, 3, 1).reshape(Cout, F)
    wh = params["hnet_weight"].transpose(0, 2, 3, 1).reshape(Cout, F)
    w_comb = _combined_weight(we, wh, wsc, es, CoutP, compute_dtype)       # (B, CoutP, F)
    bias3 = _pad_cols(bias, CoutP)[..., None].astype(jnp.float32)          # (B, CoutP, 1)

    # Row-tile slabs with K-1 halo rows (tiny duplication, no K*K patch blowup).
    xp = jnp.pad(x, ((0, 0), (0, 0), (padding, padding), (padding, padding)))
    slab_rows = TH + K - 1
    slab_len = slab_rows * Wp + (K - 1)                # +K-1 zeros so the last tap never OOBs
    slabs = []
    for t in range(n_ht):
        sl = xp[:, :, t * TH:t * TH + slab_rows, :].reshape(B, Cin, slab_rows * Wp)
        slabs.append(jnp.pad(sl, ((0, 0), (0, 0), (0, K - 1))))
    x_slabs = jnp.stack(slabs, axis=1).astype(compute_dtype)   # (B, n_ht, Cin, slab_len)

    kern = functools.partial(_hyperconv_fused_kernel, K=K, Wp=Wp)
    out_wide = pl.pallas_call(
        kern,
        out_shape=jax.ShapeDtypeStruct((B, CoutP, Ho * Wp), jnp.float32),
        grid_spec=pltpu.PrefetchScalarGridSpec(
            num_scalar_prefetch=0,
            grid=(B, n_ht),
            in_specs=[
                pl.BlockSpec((1, 1, Cin, slab_len), lambda b, t: (b, t, 0, 0)),
                pl.BlockSpec((1, CoutP, F), lambda b, t: (b, 0, 0)),
                pl.BlockSpec((1, CoutP, 1), lambda b, t: (b, 0, 0)),
            ],
            out_specs=pl.BlockSpec((1, CoutP, tpw), lambda b, t: (b, 0, t)),
        ),
        compiler_params=pltpu.CompilerParams(
            dimension_semantics=("parallel", "parallel"),
            vmem_limit_bytes=int(0.75 * vmem_cap),
        ),
    )(x_slabs, w_comb, bias3)

    # Wide output (width Wp, garbage in the last K-1 columns) -> valid NCHW.
    return out_wide.reshape(B, CoutP, Ho, Wp)[:, :Cout, :, :Wo]


# --------------------------------------------------------------------------
# Fallback path (stride != 1 or VMEM-constrained): wrapper-side im2col
# --------------------------------------------------------------------------

def _im2col_t(x, K, padding, stride):
    """x: (B, Cin, H, W) -> patches (B, Cin*K*K, Ho*Wo); feature order (Cin, Kh, Kw)."""
    B, Cin, H, W = x.shape
    Ho = (H + 2 * padding - K) // stride + 1
    Wo = (W + 2 * padding - K) // stride + 1
    xp = jnp.pad(x, ((0, 0), (0, 0), (padding, padding), (padding, padding)))
    views = []
    for i in range(K):
        for j in range(K):
            views.append(xp[:, :, i:i + stride * Ho:stride, j:j + stride * Wo:stride])
    pat = jnp.stack(views, axis=2)                    # (B, Cin, K*K, Ho, Wo)
    return pat.reshape(B, Cin * K * K, Ho * Wo), Ho, Wo


def _hyperconv_patch_kernel(p_ref, w_ref, bias_ref, out_ref):
    # p_ref: (1, KKC, TP); w_ref: (1, CoutP, KKC); bias_ref: (1, CoutP, 1); out: (1, CoutP, TP)
    acc = jnp.dot(w_ref[0], p_ref[0], preferred_element_type=jnp.float32)
    out_ref[0] = (acc + bias_ref[0]).astype(out_ref.dtype)


def _choose_tp(P, KKC, CoutP, itemsize, budget):
    """Largest P tile fitting VMEM; prefer divisors of P so no output padding is needed."""
    def ws(tp):
        return (2 * (KKC * tp * itemsize + CoutP * tp * 4 + CoutP * KKC * itemsize)
                + CoutP * tp * 4 + 8 * CoutP * 4)
    p128 = _round_up(max(P, 1), 128)
    cands = [tp for tp in (8192, 4096, 2048, 1024, 512, 256, 128)
             if tp <= p128 and ws(tp) <= budget]
    if not cands:
        return 128
    for tp in cands:
        if P % tp == 0:
            return tp
    return cands[0]


def _forward_patches(x, params, wsc, bias, *, K, padding, stride, compute_dtype, vmem_cap):
    B, Cin, H, W = x.shape
    Cout = params["elem_weight"].shape[0]
    KKC = Cin * K * K
    CoutP = _round_up(Cout, 8)
    itemsize = jnp.dtype(compute_dtype).itemsize

    patches, Ho, Wo = _im2col_t(x, K, padding, stride)            # (B, KKC, P)
    P = Ho * Wo
    TP = _choose_tp(P, KKC, CoutP, itemsize, budget=vmem_cap // 2)
    P_pad = _round_up(P, TP)
    if P_pad != P:
        patches = jnp.pad(patches, ((0, 0), (0, 0), (0, P_pad - P)))
    patches = patches.astype(compute_dtype)

    es = params["elem_scalar"][0]
    we = params["elem_weight"].reshape(Cout, KKC)                 # feature order (c, i, j)
    wh = params["hnet_weight"].reshape(Cout, KKC)
    w_comb = _combined_weight(we, wh, wsc, es, CoutP, compute_dtype)
    bias3 = _pad_cols(bias, CoutP)[..., None].astype(jnp.float32)

    n_tp = P_pad // TP
    out = pl.pallas_call(
        _hyperconv_patch_kernel,
        out_shape=jax.ShapeDtypeStruct((B, CoutP, P_pad), jnp.float32),
        grid_spec=pltpu.PrefetchScalarGridSpec(
            num_scalar_prefetch=0,
            grid=(B, n_tp),
            in_specs=[
                pl.BlockSpec((1, KKC, TP), lambda b, p: (b, 0, p)),
                pl.BlockSpec((1, CoutP, KKC), lambda b, p: (b, 0, 0)),
                pl.BlockSpec((1, CoutP, 1), lambda b, p: (b, 0, 0)),
            ],
            out_specs=pl.BlockSpec((1, CoutP, TP), lambda b, p: (b, 0, p)),
        ),
        compiler_params=pltpu.CompilerParams(
            dimension_semantics=("parallel", "parallel"),
            vmem_limit_bytes=int(0.75 * vmem_cap),
        ),
    )(patches, w_comb, bias3)
    return out[:, :Cout, :P].reshape(B, Cout, Ho, Wo)


# --------------------------------------------------------------------------
# Public forward
# --------------------------------------------------------------------------

def hyperconv2d_forward(x, htensor, params, *, kernel_size, padding, stride=1,
                        compute_dtype=jnp.bfloat16):
    """x: (B, Cin, H, W) f32, htensor: (B, D) f32 -> (B, Cout, Ho, Wo) f32."""
    wsc, bias = _fused_scalars(htensor, params)
    vmem_cap = _vmem_capacity_bytes()
    if stride == 1:
        out = _forward_fused(x, params, wsc, bias, K=kernel_size, padding=padding,
                             compute_dtype=compute_dtype, vmem_cap=vmem_cap)
        if out is not None:
            return out
    # TODO(synk): strided / oversized configs use the wrapper im2col fallback (K*K
    # patch blowup in HBM); an in-kernel strided-slab variant would remove it too.
    return _forward_patches(x, params, wsc, bias, K=kernel_size, padding=padding,
                            stride=stride, compute_dtype=compute_dtype, vmem_cap=vmem_cap)


# --------------------------------------------------------------------------
# Reference + params (verification only)
# --------------------------------------------------------------------------

def _reference_forward(x, htensor, params, *, padding, stride):
    dn = jax.lax.conv_dimension_numbers(x.shape, params["elem_weight"].shape,
                                        ("NCHW", "OIHW", "NCHW"))
    pad = [(padding, padding), (padding, padding)]
    out = jax.lax.conv_general_dilated(x, params["elem_weight"], (stride, stride),
                                       pad, dimension_numbers=dn)
    out = out + params["elem_bias"][None, :, None, None]
    out = out * params["elem_scalar"][0]

    hnet_scalars = htensor @ params["htensor_to_scalars"].T      # (B, 2*Cout)
    Cout = params["elem_weight"].shape[0]
    wsc = hnet_scalars[:, :Cout][:, :, None, None]
    bsc = hnet_scalars[:, Cout:]
    hnet_out = jax.lax.conv_general_dilated(x, params["hnet_weight"], (stride, stride),
                                            pad, dimension_numbers=dn)
    hnet_out = hnet_out * wsc
    hnet_out = hnet_out + (bsc * params["hnet_bias"])[:, :, None, None]
    return out + hnet_out


def init_params(key, in_channels, out_channels, kernel_size, num_hparams):
    n = in_channels * kernel_size * kernel_size
    stdv = 1.0 / math.sqrt(n)
    k1, k2, k3, k4, k5 = jax.random.split(key, 5)
    return {
        "elem_weight": jax.random.uniform(
            k1, (out_channels, in_channels, kernel_size, kernel_size),
            jnp.float32, -stdv, stdv),
        "hnet_weight": jax.random.uniform(
            k2, (out_channels, in_channels, kernel_size, kernel_size),
            jnp.float32, -stdv, stdv),
        "elem_bias": jax.random.uniform(k3, (out_channels,), jnp.float32, -stdv, stdv),
        "hnet_bias": jax.random.uniform(k4, (out_channels,), jnp.float32, -stdv, stdv),
        "htensor_to_scalars": 0.01 * jax.random.normal(
            k5, (2 * out_channels, num_hparams), jnp.float32),
        "elem_scalar": jnp.ones((1,), jnp.float32),
    }


if __name__ == "__main__":
    B, Cin, H, W = 2, 4, 16, 16
    Cout, K, pad, num_hparams = 8, 3, 1, 6

    key = jax.random.PRNGKey(0)
    kx, kh, kp = jax.random.split(key, 3)
    x = jax.random.normal(kx, (B, Cin, H, W), jnp.float32)
    htensor = jax.random.normal(kh, (B, num_hparams), jnp.float32)
    params = init_params(kp, Cin, Cout, K, num_hparams)

    # stride=1: fused in-kernel-im2col path, bf16 operands (default).
    ref = np.asarray(_reference_forward(x, htensor, params, padding=pad, stride=1))
    fwd_bf16 = jax.jit(functools.partial(hyperconv2d_forward, kernel_size=K,
                                         padding=pad, stride=1))
    out_bf16 = jax.block_until_ready(fwd_bf16(x, htensor, params))
    assert out_bf16.shape == ref.shape, (out_bf16.shape, ref.shape)
    rel = np.max(np.abs(np.asarray(out_bf16) - ref)) / (np.max(np.abs(ref)) + 1e-6)
    assert rel < 5e-2, f"bf16 fused path relative error too large: {rel}"

    # stride=1, f32 operands: tight tolerance.
    fwd_f32 = jax.jit(functools.partial(hyperconv2d_forward, kernel_size=K,
                                        padding=pad, stride=1,
                                        compute_dtype=jnp.float32))
    out_f32 = jax.block_until_ready(fwd_f32(x, htensor, params))
    np.testing.assert_allclose(np.asarray(out_f32), ref, rtol=1e-4, atol=1e-4)

    # stride=2: wrapper-im2col fallback path, f32 operands.
    ref2 = np.asarray(_reference_forward(x, htensor, params, padding=pad, stride=2))
    fwd_s2 = jax.jit(functools.partial(hyperconv2d_forward, kernel_size=K,
                                       padding=pad, stride=2,
                                       compute_dtype=jnp.float32))
    out_s2 = jax.block_until_ready(fwd_s2(x, htensor, params))
    np.testing.assert_allclose(np.asarray(out_s2), ref2, rtol=1e-4, atol=1e-4)

    print("KERNEL_OK")
</pallas_src>

<mosaic_0001>
module attributes {stable_mosaic.version = 11 : i64} {
  func.func @_hyperconv_fused_kernel(%arg0: i32, %arg1: i32, %arg2: memref<1x1x4x326xbf16, #tpu.memory_space<vmem>>, %arg3: memref<1x8x36xbf16, #tpu.memory_space<vmem>>, %arg4: memref<1x8x1xf32, #tpu.memory_space<vmem>>, %arg5: memref<1x8x288xf32, #tpu.memory_space<vmem>>) attributes {dimension_semantics = [#tpu.dimension_semantics<parallel>, #tpu.dimension_semantics<parallel>], iteration_bounds = array<i64: 2, 1>, scalar_prefetch = 0 : i64, scratch_operands = 0 : i64, tpu.core_type = #tpu.core_type<tc>, window_params = [{transform_indices = @transform_0, window_bounds = array<i64: 1, 1, 4, 326>}, {transform_indices = @transform_1, window_bounds = array<i64: 1, 8, 36>}, {transform_indices = @transform_2, window_bounds = array<i64: 1, 8, 1>}, {transform_indices = @transform_3, window_bounds = array<i64: 1, 8, 288>}]} {
    %c0 = arith.constant 0 : index
    %c0_0 = arith.constant 0 : index
    %c0_1 = arith.constant 0 : index
    %c0_2 = arith.constant 0 : index
    %0 = vector.load %arg2[%c0, %c0_0, %c0_1, %c0_2] : memref<1x1x4x326xbf16, #tpu.memory_space<vmem>>, vector<1x1x4x288xbf16>
    %1 = vector.shape_cast %0 : vector<1x1x4x288xbf16> to vector<4x288xbf16>
    %c0_3 = arith.constant 0 : index
    %c0_4 = arith.constant 0 : index
    %c0_5 = arith.constant 0 : index
    %c1 = arith.constant 1 : index
    %2 = vector.load %arg2[%c0_3, %c0_4, %c0_5, %c1] : memref<1x1x4x326xbf16, #tpu.memory_space<vmem>>, vector<1x1x4x288xbf16>
    %3 = vector.shape_cast %2 : vector<1x1x4x288xbf16> to vector<4x288xbf16>
    %c0_6 = arith.constant 0 : index
    %c0_7 = arith.constant 0 : index
    %c0_8 = arith.constant 0 : index
    %c2 = arith.constant 2 : index
    %4 = vector.load %arg2[%c0_6, %c0_7, %c0_8, %c2] : memref<1x1x4x326xbf16, #tpu.memory_space<vmem>>, vector<1x1x4x288xbf16>
    %5 = vector.shape_cast %4 : vector<1x1x4x288xbf16> to vector<4x288xbf16>
    %c0_9 = arith.constant 0 : index
    %c0_10 = arith.constant 0 : index
    %c0_11 = arith.constant 0 : index
    %c18 = arith.constant 18 : index
    %6 = vector.load %arg2[%c0_9, %c0_10, %c0_11, %c18] : memref<1x1x4x326xbf16, #tpu.memory_space<vmem>>, vector<1x1x4x288xbf16>
    %7 = vector.shape_cast %6 : vector<1x1x4x288xbf16> to vector<4x288xbf16>
    %c0_12 = arith.constant 0 : index
    %c0_13 = arith.constant 0 : index
    %c0_14 = arith.constant 0 : index
    %c19 = arith.constant 19 : index
    %8 = vector.load %arg2[%c0_12, %c0_13, %c0_14, %c19] : memref<1x1x4x326xbf16, #tpu.memory_space<vmem>>, vector<1x1x4x288xbf16>
    %9 = vector.shape_cast %8 : vector<1x1x4x288xbf16> to vector<4x288xbf16>
    %c0_15 = arith.constant 0 : index
    %c0_16 = arith.constant 0 : index
    %c0_17 = arith.constant 0 : index
    %c20 = arith.constant 20 : index
    %10 = vector.load %arg2[%c0_15, %c0_16, %c0_17, %c20] : memref<1x1x4x326xbf16, #tpu.memory_space<vmem>>, vector<1x1x4x288xbf16>
    %11 = vector.shape_cast %10 : vector<1x1x4x288xbf16> to vector<4x288xbf16>
    %c0_18 = arith.constant 0 : index
    %c0_19 = arith.constant 0 : index
    %c0_20 = arith.constant 0 : index
    %c36 = arith.constant 36 : index
    %12 = vector.load %arg2[%c0_18, %c0_19, %c0_20, %c36] : memref<1x1x4x326xbf16, #tpu.memory_space<vmem>>, vector<1x1x4x288xbf16>
    %13 = vector.shape_cast %12 : vector<1x1x4x288xbf16> to vector<4x288xbf16>
    %c0_21 = arith.constant 0 : index
    %c0_22 = arith.constant 0 : index
    %c0_23 = arith.constant 0 : index
    %c37 = arith.constant 37 : index
    %14 = vector.load %arg2[%c0_21, %c0_22, %c0_23, %c37] : memref<1x1x4x326xbf16, #tpu.memory_space<vmem>>, vector<1x1x4x288xbf16>
    %15 = vector.shape_cast %14 : vector<1x1x4x288xbf16> to vector<4x288xbf16>
    %c0_24 = arith.constant 0 : index
    %c0_25 = arith.constant 0 : index
    %c0_26 = arith.constant 0 : index
    %c38 = arith.constant 38 : index
    %16 = vector.load %arg2[%c0_24, %c0_25, %c0_26, %c38] : memref<1x1x4x326xbf16, #tpu.memory_space<vmem>>, vector<1x1x4x288xbf16>
    %17 = vector.shape_cast %16 : vector<1x1x4x288xbf16> to vector<4x288xbf16>
    %18 = tpu.concatenate %1, %3, %5, %7, %9, %11, %13, %15, %17 in 0 : vector<4x288xbf16>, vector<4x288xbf16>, vector<4x288xbf16>, vector<4x288xbf16>, vector<4x288xbf16>, vector<4x288xbf16>, vector<4x288xbf16>, vector<4x288xbf16>, vector<4x288xbf16> -> vector<36x288xbf16>
    %c0_27 = arith.constant 0 : index
    %c0_28 = arith.constant 0 : index
    %c0_29 = arith.constant 0 : index
    %19 = vector.load %arg3[%c0_27, %c0_28, %c0_29] : memref<1x8x36xbf16, #tpu.memory_space<vmem>>, vector<1x8x36xbf16>
    %20 = vector.shape_cast %19 : vector<1x8x36xbf16> to vector<8x36xbf16>
    %cst = arith.constant dense<0.000000e+00> : vector<8x288xf32>
    %21 = tpu.matmul %20, %18, %cst {dimension_numbers = #tpu.dot_dimension_numbers<[1], [0], [0], [1], [0, 0, 1, 1], [], []>} : vector<8x36xbf16>, vector<36x288xbf16>, vector<8x288xf32> -> vector<8x288xf32>
    %c0_30 = arith.constant 0 : index
    %c0_31 = arith.constant 0 : index
    %c0_32 = arith.constant 0 : index
    %22 = vector.load %arg4[%c0_30, %c0_31, %c0_32] : memref<1x8x1xf32, #tpu.memory_space<vmem>>, vector<1x8x1xf32>
    %23 = vector.shape_cast %22 : vector<1x8x1xf32> to vector<8x1xf32>
    %24 = vector.broadcast %23 : vector<8x1xf32> to vector<8x288xf32>
    %25 = arith.addf %21, %24 : vector<8x288xf32>
    %c0_33 = arith.constant 0 : index
    %c0_34 = arith.constant 0 : index
    %c0_35 = arith.constant 0 : index
    %26 = vector.load %arg5[%c0_33, %c0_34, %c0_35] : memref<1x8x288xf32, #tpu.memory_space<vmem>>, vector<1x8x288xf32>
    %27 = vector.shape_cast %26 : vector<1x8x288xf32> to vector<8x288xf32>
    %28 = vector.shape_cast %25 : vector<8x288xf32> to vector<1x8x288xf32>
    tpu.vector_store %arg5[%c0_33, %c0_34, %c0_35], %28 {strides = array<i32>} : memref<1x8x288xf32, #tpu.memory_space<vmem>>, vector<1x8x288xf32>,
    return
  }
  func.func @transform_0(%arg0: i32, %arg1: i32) -> (i32, i32, i32, i32) {
    %c0_i32 = arith.constant 0 : i32
    %c0_i32_0 = arith.constant 0 : i32
    %c0_i32_1 = arith.constant 0 : i32
    return %arg0, %arg1, %c0_i32, %c0_i32_0 : i32, i32, i32, i32
  }
  func.func @transform_1(%arg0: i32, %arg1: i32) -> (i32, i32, i32) {
    %c0_i32 = arith.constant 0 : i32
    %c0_i32_0 = arith.constant 0 : i32
    %c0_i32_1 = arith.constant 0 : i32
    return %arg0, %c0_i32, %c0_i32_0 : i32, i32, i32
  }
  func.func @transform_2(%arg0: i32, %arg1: i32) -> (i32, i32, i32) {
    %c0_i32 = arith.constant 0 : i32
    %c0_i32_0 = arith.constant 0 : i32
    %c0_i32_1 = arith.constant 0 : i32
    return %arg0, %c0_i32, %c0_i32_0 : i32, i32, i32
  }
  func.func @transform_3(%arg0: i32, %arg1: i32) -> (i32, i32, i32) {
    %c0_i32 = arith.constant 0 : i32
    %c0_i32_0 = arith.constant 0 : i32
    return %arg0, %c0_i32, %arg1 : i32, i32, i32
  }
}

</mosaic_0001>

<llo_original>
// kernel: hyperconv2d_forward.1
$region0: #{hyperconv2d_forward.1}
  #allocation0 [shape = 'u32[]', space=smem, size = 0x4, offset = 0x4, fixed_abs, tag = 'smem constant byte address 0x4 - core index']
  #allocation1 [shape = 'u32[144,128]{1,0:T(1,128)}', space=vmem, size = 0x12000, scoped, tag = 'internal scratch']
  %s0 = inlined_call_operand.vmem [shape: bf16[2,1,4,326], index: 0, kind: input, shape index: {}]
  %s1 = inlined_call_operand.vmem [shape: bf16[2,8,36], index: 1, kind: input, shape index: {}]
  %s2 = inlined_call_operand.vmem [shape: f32[2,8,1], index: 2, kind: input, shape index: {}]
  %s3 = inlined_call_operand.vmem [shape: f32[2,8,288], index: 3, kind: output, shape index: {}]
  %s4 = sld [smem:[#allocation0]]
  $region45: #{hyperconv2d_forward.1} parent=0
    _
  %s6 = ssub.s32 1, %s4
  %s7 = scalar_select 0, %s6, %s4
  loop: start=0, step=1, limit=4
  $region2: #{hyperconv2d_forward.1} parent=0 // loop_pre_header
    _
  $region3: #{hyperconv2d_forward.1} parent=0 // loop_header
    %s9 = sphi 0, %s13
    %p10 = scmp.ge.s32.totalorder %s9, 4
    %s16 = sphi 0, %s28
    %s17 = sphi 0, %s24
    %s18 = sphi 0, %s16
    %s19 = sphi 0, %s17
    %s20 = sphi 0, %s18
    %s21 = sphi 0, %s19
    %s33 = sphi 0, %s35
    %s36 = sphi 0, %s33
    %s37 = sphi 0, %s36
    %s53 = sphi 0, %s37
    %s59 = sphi 0, %s61
    %s62 = sphi 0, %s59
    %s63 = sphi 0, %s62
    %s79 = sphi 0, %s63
    %s85 = sphi 0, %s87
    %s88 = sphi 0, %s85
    %s89 = sphi 0, %s88
    %s105 = sphi 0, %s89
    %s113 = sphi 0, %s115
    %s116 = sphi 0, %s113
    %s117 = sphi 0, %s116
    %s133 = sphi 0, %s117
  $region4: #{hyperconv2d_forward.1} parent=0 // loop_header_branch
    %12 = sbr.rel (%p10) target = $region8
  $region5: #{hyperconv2d_forward.1} parent=0 // loop_body
    %s14 = ssub.s32 %s9, 1
    %s15 = ssub.s32 %s9, 2
    %s22 = sadd.s32 1, %s17
    %p23 = scmp.ge.s32.totalorder %s22, 1
    %s24 = scalar_select %p23, 0, %s22
    %s25 = sadd.s32 1, %s16
    %s26 = scalar_select %p23, %s25, %s16
    %p27 = scmp.ge.s32.totalorder %s26, 2
    %s28 = scalar_select %p27, 0, %s26
    %s29 = ssub.s32 %s16, %s28
    %s30 = ssub.s32 %s17, %s24
    %s31 = sor.u32 %s29, %s30
    %p32 = scmp.eq.s32.totalorder %s31, 0
    %s34 = sadd.s32 %s33, 1
    %s35 = scalar_select %p32, %s33, %s34
    %p38 = pneg %p32
    %p39 = scmp.eq.s32.totalorder %s9, 1
    %p40 = por %p38, %p39
    %p41 = scmp.ne.s32.totalorder %s33, %s36
    %p42 = scmp.eq.s32.totalorder %s9, 0
    %p43 = por %p41, %p42
    %p44 = scmp.ne.s32.totalorder %s33, %s36
    %p45 = scmp.eq.s32.totalorder %s14, 1
    %p46 = por %p44, %p45
    %p47 = scmp.ne.s32.totalorder %s36, %s37
    %p48 = scmp.eq.s32.totalorder %s14, 0
    %p49 = por %p47, %p48
    %p50 = scmp.ne.s32.totalorder %s36, %s37
    %p51 = scmp.eq.s32.totalorder %s15, 1
    %p52 = por %p50, %p51
    %p54 = scmp.ne.s32.totalorder %s37, %s53
    %p55 = scmp.eq.s32.totalorder %s15, 0
    %p56 = por %p54, %p55
    %s57 = ssub.s32 %s16, %s28
    %p58 = scmp.eq.s32.totalorder %s57, 0
    %s60 = sadd.s32 %s59, 1
    %s61 = scalar_select %p58, %s59, %s60
    %p64 = pneg %p58
    %p65 = scmp.eq.s32.totalorder %s9, 1
    %p66 = por %p64, %p65
    %p67 = scmp.ne.s32.totalorder %s59, %s62
    %p68 = scmp.eq.s32.totalorder %s9, 0
    %p69 = por %p67, %p68
    %p70 = scmp.ne.s32.totalorder %s59, %s62
    %p71 = scmp.eq.s32.totalorder %s14, 1
    %p72 = por %p70, %p71
    %p73 = scmp.ne.s32.totalorder %s62, %s63
    %p74 = scmp.eq.s32.totalorder %s14, 0
    %p75 = por %p73, %p74
    %p76 = scmp.ne.s32.totalorder %s62, %s63
    %p77 = scmp.eq.s32.totalorder %s15, 1
    %p78 = por %p76, %p77
    %p80 = scmp.ne.s32.totalorder %s63, %s79
    %p81 = scmp.eq.s32.totalorder %s15, 0
    %p82 = por %p80, %p81
    %s83 = ssub.s32 %s16, %s28
    %p84 = scmp.eq.s32.totalorder %s83, 0
    %s86 = sadd.s32 %s85, 1
    %s87 = scalar_select %p84, %s85, %s86
    %p90 = pneg %p84
    %p91 = scmp.eq.s32.totalorder %s9, 1
    %p92 = por %p90, %p91
    %p93 = scmp.ne.s32.totalorder %s85, %s88
    %p94 = scmp.eq.s32.totalorder %s9, 0
    %p95 = por %p93, %p94
    %p96 = scmp.ne.s32.totalorder %s85, %s88
    %p97 = scmp.eq.s32.totalorder %s14, 1
    %p98 = por %p96, %p97
    %p99 = scmp.ne.s32.totalorder %s88, %s89
    %p100 = scmp.eq.s32.totalorder %s14, 0
    %p101 = por %p99, %p100
    %p102 = scmp.ne.s32.totalorder %s88, %s89
    %p103 = scmp.eq.s32.totalorder %s15, 1
    %p104 = por %p102, %p103
    %p106 = scmp.ne.s32.totalorder %s89, %s105
    %p107 = scmp.eq.s32.totalorder %s15, 0
    %p108 = por %p106, %p107
    %s109 = ssub.s32 %s16, %s28
    %s110 = ssub.s32 %s17, %s24
    %s111 = sor.u32 %s109, %s110
    %p112 = scmp.eq.s32.totalorder %s111, 0
    %s114 = sadd.s32 %s113, 1
    %s115 = scalar_select %p112, %s113, %s114
    %p118 = pneg %p112
    %p119 = scmp.eq.s32.totalorder %s9, 1
    %p120 = por %p118, %p119
    %p121 = scmp.ne.s32.totalorder %s113, %s116
    %p122 = scmp.eq.s32.totalorder %s9, 0
    %p123 = por %p121, %p122
    %p124 = scmp.ne.s32.totalorder %s113, %s116
    %p125 = scmp.eq.s32.totalorder %s14, 1
    %p126 = por %p124, %p125
    %p127 = scmp.ne.s32.totalorder %s116, %s117
    %p128 = scmp.eq.s32.totalorder %s14, 0
    %p129 = por %p127, %p128
    %p130 = scmp.ne.s32.totalorder %s116, %s117
    %p131 = scmp.eq.s32.totalorder %s15, 1
    %p132 = por %p130, %p131
    %p134 = scmp.ne.s32.totalorder %s117, %s133
    %p135 = scmp.eq.s32.totalorder %s15, 0
    %p136 = por %p134, %p135
    %p137 = scmp.le.s32.totalorder 1, %s9
    %p138 = scmp.lt.s32.totalorder %s9, 3
    %p139 = pnand %p137, %p138
    %p140 = pneg %p139
    // Predicated region
    $region9: #{hyperconv2d_forward.1} parent=5 // pred_check
      _
    $region10: #{hyperconv2d_forward.1} parent=5 // pred_check_branch
      %142 = sbr.rel (%p139) target = $region12
    $region11: #{hyperconv2d_forward.1} parent=5 // pred_region
      %s143 = ssub.s32 %s9, 1
    $region12: #{hyperconv2d_forward.1} parent=5 // pred_fallthru
      _
    %p144 = scmp.lt.s32.totalorder %s9, 2
    // Predicated region
    $region13: #{hyperconv2d_forward.1} parent=5 // pred_check
      %p145 = pneg %p144
    $region14: #{hyperconv2d_forward.1} parent=5 // pred_check_branch
      %147 = sbr.rel (%p145) target = $region16
    $region15: #{hyperconv2d_forward.1} parent=5 // pred_region
      // Predicated region
      $region17: #{hyperconv2d_forward.1} parent=15 // pred_check
        %p148 = pneg %p43
      $region18: #{hyperconv2d_forward.1} parent=15 // pred_check_branch
        %150 = sbr.rel (%p148) target = $region20
      $region19: #{hyperconv2d_forward.1} parent=15 // pred_region
        %p151 = scmp.lt.s32.totalorder %s16, 1
        %s152 = scalar_select %p151, %s16, 1
        %p153 = scmp.lt.s32.totalorder %s17, 0
        %s154 = scalar_select %p153, %s17, 0
        %s155 = smul.addr %s154, 3
        %s156 = smul.addr %s152, 3
        %s157 = sadd.s32 %s155, %s156
        %s158 = smul.addr %s157, 2
        %s159 = scalar_lea.vmem %s0, %s158
      $region20: #{hyperconv2d_forward.1} parent=15 // pred_fallthru
        _
      // Predicated region
      $region21: #{hyperconv2d_forward.1} parent=15 // pred_check
        %p160 = pneg %p69
      $region22: #{hyperconv2d_forward.1} parent=15 // pred_check_branch
        %162 = sbr.rel (%p160) target = $region24
      $region23: #{hyperconv2d_forward.1} parent=15 // pred_region
        %p163 = scmp.lt.s32.totalorder %s16, 1
        %s164 = scalar_select %p163, %s16, 1
        %s165 = smul.addr %s164, 4
        %s166 = scalar_lea.vmem %s1, %s165
      $region24: #{hyperconv2d_forward.1} parent=15 // pred_fallthru
        _
      // Predicated region
      $region25: #{hyperconv2d_forward.1} parent=15 // pred_check
        %p167 = pneg %p95
      $region26: #{hyperconv2d_forward.1} parent=15 // pred_check_branch
        %169 = sbr.rel (%p167) target = $region28
      $region27: #{hyperconv2d_forward.1} parent=15 // pred_region
        %p170 = scmp.lt.s32.totalorder %s16, 1
        %s171 = scalar_select %p170, %s16, 1
        %s172 = smul.addr %s171, 8
        %s173 = scalar_lea.vmem %s2, %s172
      $region28: #{hyperconv2d_forward.1} parent=15 // pred_fallthru
        _
    $region16: #{hyperconv2d_forward.1} parent=5 // pred_fallthru
      _
    %p174 = scmp.le.s32.totalorder 1, %s9
    %p175 = scmp.lt.s32.totalorder %s9, 3
    %p176 = pnand %p174, %p175
    %p177 = pneg %p176
    // Predicated region
    $region29: #{hyperconv2d_forward.1} parent=5 // pred_check
      _
    $region30: #{hyperconv2d_forward.1} parent=5 // pred_check_branch
      %179 = sbr.rel (%p176) target = $region32
    $region31: #{hyperconv2d_forward.1} parent=5 // pred_region
      %s180 = ssub.s32 %s9, 1
      %p181 = scmp.lt.s32.totalorder %s18, 1
      %s182 = scalar_select %p181, %s18, 1
      %p183 = scmp.lt.s32.totalorder %s19, 0
      %s184 = scalar_select %p183, %s19, 0
      %s185 = smul.addr %s184, 3
      %s186 = smul.addr %s182, 3
      %s187 = sadd.s32 %s185, %s186
      %s188 = smul.addr %s187, 2
      %s189 = scalar_lea.vmem %s0, %s188
      %p190 = pneg %p49
      %p191 = pneg %p46
      %p192 = scmp.lt.s32.totalorder %s18, 1
      %s193 = scalar_select %p192, %s18, 1
      %s194 = smul.addr %s193, 4
      %s195 = scalar_lea.vmem %s1, %s194
      %p196 = pneg %p75
      %p197 = pneg %p72
      %p198 = scmp.lt.s32.totalorder %s18, 1
      %s199 = scalar_select %p198, %s18, 1
      %s200 = smul.addr %s199, 8
      %s201 = scalar_lea.vmem %s2, %s200
      %p202 = pneg %p101
      %p203 = pneg %p98
      %p204 = pneg %p129
      %p205 = pneg %p126
      %s206 = smul.u32 3, %s19
      %p207 = scmp.lt.s32.totalorder %s18, 1
      %s208 = scalar_select %p207, %s18, 1
      %p209 = scmp.lt.s32.totalorder %s206, 2
      %s210 = scalar_select %p209, %s206, 2
      %s211 = smul.addr %s208, 3
      %s212 = sadd.s32 %s210, %s211
      %s213 = smul.addr %s212, 8
      %s214 = scalar_lea.vmem %s3, %s213
      %p215 = scmp.lt.s32.totalorder %s18, 1
      %s216 = scalar_select %p215, %s18, 1
      %p217 = scmp.lt.s32.totalorder %s19, 0
      %s218 = scalar_select %p217, %s19, 0
      %s219 = smul.addr %s218, 3
      %s220 = smul.addr %s216, 3
      %s221 = sadd.s32 %s219, %s220
      %s222 = smul.addr %s221, 2
      %s223 = scalar_lea.vmem %s0, %s222
      %p224 = scmp.lt.s32.totalorder %s18, 1
      %s225 = scalar_select %p224, %s18, 1
      %s226 = smul.addr %s225, 4
      %s227 = scalar_lea.vmem %s1, %s226
      %p228 = scmp.lt.s32.totalorder %s18, 1
      %s229 = scalar_select %p228, %s18, 1
      %s230 = smul.addr %s229, 8
      %s231 = scalar_lea.vmem %s2, %s230
      %s232 = smul.u32 3, %s19
      %p233 = scmp.lt.s32.totalorder %s18, 1
      %s234 = scalar_select %p233, %s18, 1
      %p235 = scmp.lt.s32.totalorder %s232, 2
      %s236 = scalar_select %p235, %s232, 2
      %s237 = smul.addr %s234, 3
      %s238 = sadd.s32 %s236, %s237
      %s239 = smul.addr %s238, 8
      %s240 = scalar_lea.vmem %s3, %s239
      %s241 = smul.u32 3, %s19
      %v243 = vld [vmem:[%s223] sm:$0x3f]
      %v245 = vcombine.high %v243, %v243
      %v247 = vunpack.c.l.s4 1983009808
      %v248 = vunpack.c.0.s8 %v247
      %v249 = vlaneseq
      %v250 = vshrl.u32 %v249, 7
      %v251 = vsub.s32 %v248, %v250
      %v252 = vrot.slane %v243, %v251
      %v254 = vunpack.c.l.s4 1983009808
      %v255 = vunpack.c.0.s8 %v254
      %v256 = vlaneseq
      %v257 = vshrl.u32 %v256, 7
      %v258 = vsub.s32 %v255, %v257
      %v259 = vrot.slane %v245, %v258
      %v260 = vcombine.high %v252, %v252
      %v261 = vcombine.low %v243, %v243
      %v263 = vunpack.c.l.s4 1983009808
      %v264 = vunpack.c.0.s8 %v263
      %v265 = vlaneseq
      %v266 = vshrl.u32 %v265, 7
      %v267 = vsub.s32 %v264, %v266
      %v268 = vrot.slane %v261, %v267
      %v269 = vcombine.high %v268, %v268
      %270 = vrot.lane.b32.xlu0 %v268, 127
      %v271 = vpop.permute.xlu0 %270
      %272 = vrot.lane.b32.xlu0 %v269, 127
      %v273 = vpop.permute.xlu0 %272
      %274 = vrot.lane.b32.xlu0 %v252, 127
      %v275 = vpop.permute.xlu0 %274
      %vm276 = vcmask 1039360
      %v277 = vsel %vm276, %v271, %v273
      %v278 = vsel %vm276, %v273, %v275
      %v279 = vcombine.low %v252, %v252
      %v280 = vcombine.low %v259, %v259
      %281 = vrot.lane.b32.xlu0 %v279, 126
      %v282 = vpop.permute.xlu0 %281
      %283 = vrot.lane.b32.xlu0 %v252, 126
      %v284 = vpop.permute.xlu0 %283
      %285 = vrot.lane.b32.xlu0 %v280, 126
      %v286 = vpop.permute.xlu0 %285
      %vm287 = vcmask 1031168
      %v288 = vsel %vm287, %v282, %v284
      %v289 = vsel %vm287, %v284, %v286
      %v290 = vcombine.low %v268, %v268
      %291 = vrot.lane.b32.xlu0 %v290, 110
      %v292 = vpop.permute.xlu0 %291
      %293 = vrot.lane.b32.xlu0 %v268, 110
      %v294 = vpop.permute.xlu0 %293
      %295 = vrot.lane.b32.xlu0 %v279, 110
      %v296 = vpop.permute.xlu0 %295
      %vm297 = vcmask 900096
      %v298 = vsel %vm297, %v292, %v294
      %v299 = vsel %vm297, %v294, %v296
      %300 = vrot.lane.b32.xlu0 %v252, 109
      %v301 = vpop.permute.xlu0 %300
      %302 = vrot.lane.b32.xlu0 %v260, 109
      %v303 = vpop.permute.xlu0 %302
      %304 = vrot.lane.b32.xlu0 %v259, 109
      %v305 = vpop.permute.xlu0 %304
      %vm306 = vcmask 891904
      %v307 = vsel %vm306, %v301, %v303
      %v308 = vsel %vm306, %v303, %v305
      %309 = vrot.lane.b32.xlu0 %v268, 108
      %v310 = vpop.permute.xlu0 %309
      %311 = vrot.lane.b32.xlu0 %v269, 108
      %v312 = vpop.permute.xlu0 %311
      %313 = vrot.lane.b32.xlu0 %v252, 108
      %v314 = vpop.permute.xlu0 %313
      %vm315 = vcmask 883712
      %v316 = vsel %vm315, %v310, %v312
      %v317 = vsel %vm315, %v312, %v314
      %318 = vrot.lane.b32.xlu0 %v279, 92
      %v319 = vpop.permute.xlu0 %318
      %320 = vrot.lane.b32.xlu0 %v252, 92
      %v321 = vpop.permute.xlu0 %320
      %322 = vrot.lane.b32.xlu0 %v280, 92
      %v323 = vpop.permute.xlu0 %322
      %vm324 = vcmask 752640
      %v325 = vsel %vm324, %v319, %v321
      %v326 = vsel %vm324, %v321, %v323
      %327 = vrot.lane.b32.xlu0 %v290, 91
      %v328 = vpop.permute.xlu0 %327
      %329 = vrot.lane.b32.xlu0 %v268, 91
      %v330 = vpop.permute.xlu0 %329
      %331 = vrot.lane.b32.xlu0 %v279, 91
      %v332 = vpop.permute.xlu0 %331
      %vm333 = vcmask 744448
      %v334 = vsel %vm333, %v328, %v330
      %v335 = vsel %vm333, %v330, %v332
      %336 = vrot.lane.b32.xlu0 %v252, 90
      %v337 = vpop.permute.xlu0 %336
      %338 = vrot.lane.b32.xlu0 %v260, 90
      %v339 = vpop.permute.xlu0 %338
      %340 = vrot.lane.b32.xlu0 %v259, 90
      %v341 = vpop.permute.xlu0 %340
      %vm342 = vcmask 736256
      %v343 = vsel %vm342, %v337, %v339
      %v344 = vsel %vm342, %v339, %v341
      %vm345 = vcmask 1041408
      %v348 = vsel %vm345, %v252, %v277
      %v351 = vsel %vm345, %v260, %v278
      %v354 = vsel %vm345, %v259, %v275
      %vm355 = vcmask 1043456
      %v357 = vsel %vm355, %v348, %v288
      %v359 = vsel %vm355, %v351, %v289
      %v361 = vsel %vm355, %v354, %v286
      %vm362 = vcmask 1045504
      %v364 = vsel %vm362, %v357, %v298
      %v367 = vsel %vm362, %v359, %v299
      %v370 = vsel %vm362, %v361, %v296
      %v374 = vsel %vm345, %v307, %v316
      %v377 = vsel %vm345, %v308, %v317
      %v380 = vsel %vm345, %v305, %v314
      %v382 = vsel %vm355, %v374, %v325
      %v384 = vsel %vm355, %v377, %v326
      %v386 = vsel %vm355, %v380, %v323
      %v388 = vsel %vm362, %v382, %v334
      %v391 = vsel %vm362, %v384, %v335
      %v394 = vsel %vm362, %v386, %v332
      %v396 = vld [vmem:[%s227] sm:$0xf]
      %v397 = vld [vmem:[%s231] sm:$0xff]
      %399 = vset.pattern.permute.xlu0 0
      %400 = vperm.xlu0 %399, %v397
      %v401 = vpop.permute.xlu0 %400
      %vm403 = vcmask 293888
      %v405 = vsel %vm403, %v396, 0
      %v408 = vsel %vm345, %v343, 0
      %v411 = vsel %vm345, %v344, 0
      %v414 = vsel %vm345, %v341, 0
      %416 = vmatprep.subr.bf16.mxu0 0
      %417 = vmatpush1.bf16.msra.mxu0 0
      %418 = vmatprep.subr.bf16.mxu0 0
      %419 = vmatpush1.bf16.msra.mxu0 0
      %420 = vmatprep.subr.bf16.mxu0 0
      %421 = vmatpush1.bf16.msra.mxu0 0
      %422 = vmatprep.subr.bf16.mxu0 0
      %423 = vmatpush1.bf16.msra.mxu0 0
      %424 = vmatprep.subr.bf16.mxu0 0
      %425 = vmatpush1.bf16.msra.mxu0 0
      %426 = vmatprep.subr.bf16.mxu0 %v411
      %427 = vmatpush1.bf16.msra.mxu0 %v408
      %428 = vmatprep.subr.bf16.mxu0 %v391
      %429 = vmatpush1.bf16.msra.mxu0 %v388
      %430 = vmatprep.subr.bf16.mxu0 %v367
      %431 = vmatpush1.bf16.msra.mxu0 %v364
      %432 = vmatprep.subr.bf16.mxu0 0
      %433 = vmatpush2.bf16.msra.mxu0 0
      %434 = vmatprep.subr.bf16.mxu0 0
      %435 = vmatpush2.bf16.msra.mxu0 0
      %436 = vmatprep.subr.bf16.mxu0 0
      %437 = vmatpush2.bf16.msra.mxu0 0
      %438 = vmatprep.subr.bf16.mxu0 0
      %439 = vmatpush2.bf16.msra.mxu0 0
      %440 = vmatprep.subr.bf16.mxu0 0
      %441 = vmatpush2.bf16.msra.mxu0 0
      %442 = vmatprep.subr.bf16.mxu0 0
      %443 = vmatpush2.bf16.msra.mxu0 0
      %444 = vmatprep.subr.bf16.mxu0 0
      %445 = vmatpush2.bf16.msra.mxu0 0
      %446 = vmatprep.subr.bf16.mxu0 0
      %447 = vmatpush2.bf16.msra.mxu0 0
      %448 = vmatprep.mubr.bf16.mxu0 0
      %449 = vmatmul.mubr.bf16.gmra.mxu0 %v405
      %v450 = vpop.f32.mrf.mxu0
      %v451 = vadd.f32 %v401, %v450
      %v452 = vpop.f32.mrf.mxu0
      %v453 = vadd.f32 %v401, %v452
      %v454 = vpop.f32.mrf.mxu0
      %v455 = vpop.f32.mrf.mxu0
      %456 = vdwg.mxu0
      %457 = vmatprep.subr.bf16.mxu0 0
      %458 = vmatpush1.bf16.msra.mxu0 0
      %459 = vmatprep.subr.bf16.mxu0 0
      %460 = vmatpush1.bf16.msra.mxu0 0
      %461 = vmatprep.subr.bf16.mxu0 0
      %462 = vmatpush1.bf16.msra.mxu0 0
      %463 = vmatprep.subr.bf16.mxu0 0
      %464 = vmatpush1.bf16.msra.mxu0 0
      %465 = vmatprep.subr.bf16.mxu0 0
      %466 = vmatpush1.bf16.msra.mxu0 0
      %467 = vmatprep.subr.bf16.mxu0 0
      %468 = vmatpush1.bf16.msra.mxu0 %v414
      %469 = vmatprep.subr.bf16.mxu0 0
      %470 = vmatpush1.bf16.msra.mxu0 %v394
      %471 = vmatprep.subr.bf16.mxu0 0
      %472 = vmatpush1.bf16.msra.mxu0 %v370
      %473 = vmatprep.subr.bf16.mxu0 0
      %474 = vmatpush2.bf16.msra.mxu0 0
      %475 = vmatprep.subr.bf16.mxu0 0
      %476 = vmatpush2.bf16.msra.mxu0 0
      %477 = vmatprep.subr.bf16.mxu0 0
      %478 = vmatpush2.bf16.msra.mxu0 0
      %479 = vmatprep.subr.bf16.mxu0 0
      %480 = vmatpush2.bf16.msra.mxu0 0
      %481 = vmatprep.subr.bf16.mxu0 0
      %482 = vmatpush2.bf16.msra.mxu0 0
      %483 = vmatprep.subr.bf16.mxu0 0
      %484 = vmatpush2.bf16.msra.mxu0 0
      %485 = vmatprep.subr.bf16.mxu0 0
      %486 = vmatpush2.bf16.msra.mxu0 0
      %487 = vmatprep.subr.bf16.mxu0 0
      %488 = vmatpush2.bf16.msra.mxu0 0
      %489 = vmatprep.mubr.bf16.mxu0 0
      %490 = vmatmul.mubr.bf16.gmra.mxu0 %v405
      %v491 = vpop.f32.mrf.mxu0
      %v492 = vadd.f32 %v401, %v491
      %v493 = vpop.f32.mrf.mxu0
      %v494 = vpop.f32.mrf.mxu0
      %v495 = vpop.f32.mrf.mxu0
      %496 = vdwg.mxu0
      %497 = vst [vmem:[%s240] sm:$0xff] %v451
      %498 = vst [vmem:[%s240 + $0x8] sm:$0xff] %v453
      %vm499 = vcmask 261120
      %500 = vst.msk [vmem:[%s240 + $0x10] sm:$0xff] %vm499, %v492
      %s501 = smul.u32 3, %s19
      %p502 = scmp.lt.s32.totalorder %s18, 1
      %s503 = scalar_select %p502, %s18, 1
      %p504 = scmp.lt.s32.totalorder %s501, 2
      %s505 = scalar_select %p504, %s501, 2
      %s506 = smul.addr %s503, 3
      %s507 = sadd.s32 %s505, %s506
      %s508 = smul.addr %s507, 8
      %s509 = scalar_lea.vmem %s3, %s508
      // Predicated region
      $region33: #{hyperconv2d_forward.1} parent=31 // pred_check
        %p510 = pneg %p126
      $region34: #{hyperconv2d_forward.1} parent=31 // pred_check_branch
        %512 = sbr.rel (%p510) target = $region36
      $region35: #{hyperconv2d_forward.1} parent=31 // pred_region
        %s513 = smul.u32 3, %s19
      $region36: #{hyperconv2d_forward.1} parent=31 // pred_fallthru
        _
    $region32: #{hyperconv2d_forward.1} parent=5 // pred_fallthru
      _
    %p514 = scmp.le.s32.totalorder 2, %s9
    // Predicated region
    $region37: #{hyperconv2d_forward.1} parent=5 // pred_check
      %p515 = pneg %p514
    $region38: #{hyperconv2d_forward.1} parent=5 // pred_check_branch
      %517 = sbr.rel (%p515) target = $region40
    $region39: #{hyperconv2d_forward.1} parent=5 // pred_region
      %s518 = ssub.s32 %s9, 2
      // Predicated region
      $region41: #{hyperconv2d_forward.1} parent=39 // pred_check
        %p519 = pneg %p132
      $region42: #{hyperconv2d_forward.1} parent=39 // pred_check_branch
        %521 = sbr.rel (%p519) target = $region44
      $region43: #{hyperconv2d_forward.1} parent=39 // pred_region
        %s522 = smul.u32 3, %s21
        %p523 = scmp.lt.s32.totalorder %s20, 1
        %s524 = scalar_select %p523, %s20, 1
        %p525 = scmp.lt.s32.totalorder %s522, 2
        %s526 = scalar_select %p525, %s522, 2
        %s527 = smul.addr %s524, 3
        %s528 = sadd.s32 %s526, %s527
        %s529 = smul.addr %s528, 8
        %s530 = scalar_lea.vmem %s3, %s529
      $region44: #{hyperconv2d_forward.1} parent=39 // pred_fallthru
        _
    $region40: #{hyperconv2d_forward.1} parent=5 // pred_fallthru
      _
  $region6: #{hyperconv2d_forward.1} parent=0 // loop_footer
    %s13 = sadd.s32 1, %s9
  $region7: #{hyperconv2d_forward.1} parent=0 // loop_footer_branch
    %8 = sbr.rel target = $region3
  $region8: #{hyperconv2d_forward.1} parent=0 // loop_exit
    _

</llo_original>
